<compile_context>
chip_gen: v6e
topology: v6e:2x2x1
jax: 0.10.0
libtpu: 0.0.40
codegen_flags: <defaults>
</compile_context>

<pallas_src>
import jax
import jax.numpy as jnp
from jax import lax
from jax.experimental import pallas as pl
from jax.experimental.pallas import tpu as pltpu

TEMPERATURE = 0.1
INV_T = 1.0 / TEMPERATURE
# All loss weights (v_d, a_d, va_d, v_g, a_g, va_g, inmodel) default to 1.


def combined_loss_kernel(v_ref, a_ref, va_ref, d_ref, g_ref, out_ref):
    v = v_ref[...]
    a = a_ref[...]
    va = va_ref[...]
    d = d_ref[...]
    g = g_ref[...]          # (B, D): genre mean already taken in the wrapper
    B = v.shape[0]

    # --- one-pass L2 normalization of all five (B, D) slabs ------------------
    # Single concat kept (one featsn slab, slice views only afterwards).
    feats = jnp.concatenate([v, a, va, d, g], axis=0)              # (5B, D)
    ss = jnp.sum(feats * feats, axis=-1, keepdims=True)            # (5B, 1)
    # rsqrt on clamped sum-of-squares == F.normalize(eps=1e-12) semantics.
    featsn = feats * lax.rsqrt(jnp.maximum(ss, 1e-24))             # (5B, D)

    # --- ONE symmetric gram on the MXU (no transposes, no second concat) -----
    gram = lax.dot_general(
        featsn, featsn,
        dimension_numbers=(((1,), (1,)), ((), ())),
        preferred_element_type=jnp.float32,
    )                                                              # (5B, 5B)

    # --- diagonals of the six contrastive blocks without an eye mask ---------
    vn = featsn[0 * B:1 * B]
    an = featsn[1 * B:2 * B]
    van = featsn[2 * B:3 * B]
    dn = featsn[3 * B:4 * B]
    gn = featsn[4 * B:5 * B]
    vsum = vn + an + van                                           # (B, D)
    diag_sum = jnp.sum(vsum * dn) + jnp.sum(vsum * gn)             # 6 diagonals

    def row_lse_sum(sim):
        # Row-direction (lane-axis) log-sum-exp only; sim already scaled by 1/T.
        m = jnp.max(sim, axis=-1, keepdims=True)
        return jnp.sum(
            m + jnp.log(jnp.sum(jnp.exp(sim - m), axis=-1, keepdims=True)))

    # Forward InfoNCE (rows = v/a/va, cols = d or g): two (3B, B) slabs.
    lse = row_lse_sum(gram[0:3 * B, 3 * B:4 * B] * INV_T)
    lse += row_lse_sum(gram[0:3 * B, 4 * B:5 * B] * INV_T)
    # Reverse InfoNCE (rows = d and g, cols = v / a / va): three (2B, B) slabs,
    # still row-direction LSEs thanks to the symmetric gram.
    lse += row_lse_sum(gram[3 * B:5 * B, 0 * B:1 * B] * INV_T)
    lse += row_lse_sum(gram[3 * B:5 * B, 1 * B:2 * B] * INV_T)
    lse += row_lse_sum(gram[3 * B:5 * B, 2 * B:3 * B] * INV_T)

    # Each of the 12 CE terms is a mean over B; diagonals appear twice
    # (forward + reverse direction) per pair.
    contrastive = (lse - 2.0 * INV_T * diag_sum) / B

    # CyclicLoss: mean((vn vn^T - an an^T)^2) * B  ==  sum(diff^2) / B
    diff = gram[0 * B:1 * B, 0 * B:1 * B] - gram[1 * B:2 * B, 1 * B:2 * B]
    cyclic = jnp.sum(diff * diff) / B

    total = contrastive + cyclic
    out_ref[...] = jnp.broadcast_to(total, (1, 1)).astype(out_ref.dtype)


def combined_loss(visual, audio, va_fusion, description, genres):
    B, D = visual.shape
    # Genre global mean hoisted out of the kernel (shrinks the genres DMA by G x
    # and avoids an in-kernel sublane reduce on a padded (B, G, D) block).
    genres_global = jnp.mean(genres, axis=1)                       # (B, D)

    cost = pl.CostEstimate(
        flops=2 * (5 * B) * (5 * B) * D + 12 * B * D,
        transcendentals=12 * B * B + 12 * B + 5 * B,               # exp + log + rsqrt
        bytes_accessed=5 * B * D * 4 + 4,
    )
    out = pl.pallas_call(
        combined_loss_kernel,
        out_shape=jax.ShapeDtypeStruct((1, 1), jnp.float32),
        in_specs=[pl.BlockSpec(memory_space=pltpu.MemorySpace.VMEM)] * 5,
        out_specs=pl.BlockSpec(memory_space=pltpu.MemorySpace.VMEM),
        compiler_params=pltpu.CompilerParams(vmem_limit_bytes=32 * 1024 * 1024),
        cost_estimate=cost,
    )(visual, audio, va_fusion, description, genres_global)
    return out[0, 0]


def reference_loss(v, a, va, d, g):
    # pure-JAX reference mirroring the PyTorch module
    def norm(x):
        return x / jnp.maximum(jnp.linalg.norm(x, axis=1, keepdims=True), 1e-12)

    def infonce(f1, f2):
        n1, n2 = norm(f1), norm(f2)
        sim = n1 @ n2.T / TEMPERATURE
        idx = jnp.arange(f1.shape[0])
        lse = jax.nn.logsumexp(sim, axis=1)
        return jnp.mean(lse - sim[idx, idx])

    def bilat(f1, f2):
        return infonce(f1, f2) + infonce(f2, f1)

    gg = jnp.mean(g, axis=1)
    desc = bilat(v, d) + bilat(a, d) + bilat(va, d)
    gen = bilat(v, gg) + bilat(a, gg) + bilat(va, gg)
    vn, an = norm(v), norm(a)
    cyc = jnp.mean((vn @ vn.T - an @ an.T) ** 2) * v.shape[0]
    return desc + gen + cyc


if __name__ == "__main__":
    B, D, G = 8, 128, 4  # batch, feature_dim, num_genres
    key = jax.random.PRNGKey(0)
    kv, ka, kva, kd, kg = jax.random.split(key, 5)
    visual = jax.random.normal(kv, (B, D), dtype=jnp.float32)
    audio = jax.random.normal(ka, (B, D), dtype=jnp.float32)
    va_fusion = jax.random.normal(kva, (B, D), dtype=jnp.float32)
    description = jax.random.normal(kd, (B, D), dtype=jnp.float32)
    genres = jax.random.normal(kg, (B, G, D), dtype=jnp.float32)

    loss = jax.jit(combined_loss)(visual, audio, va_fusion, description, genres)
    loss = jax.block_until_ready(loss)

    ref = reference_loss(visual, audio, va_fusion, description, genres)
    assert jnp.isfinite(loss), "kernel produced non-finite loss"
    assert jnp.allclose(loss, ref, rtol=1e-3, atol=1e-3), (loss, ref)
    print("KERNEL_OK")
</pallas_src>

<mosaic_0001>
module attributes {stable_mosaic.version = 11 : i64} {
  func.func @combined_loss_kernel(%arg0: memref<8x128xf32, #tpu.memory_space<vmem>>, %arg1: memref<8x128xf32, #tpu.memory_space<vmem>>, %arg2: memref<8x128xf32, #tpu.memory_space<vmem>>, %arg3: memref<8x128xf32, #tpu.memory_space<vmem>>, %arg4: memref<8x128xf32, #tpu.memory_space<vmem>>, %arg5: memref<1x1xf32, #tpu.memory_space<vmem>>) attributes {dimension_semantics = [], scalar_prefetch = 0 : i64, scratch_operands = 0 : i64, tpu.core_type = #tpu.core_type<tc>} {
    %c0 = arith.constant 0 : index
    %c0_0 = arith.constant 0 : index
    %0 = vector.load %arg0[%c0, %c0_0] : memref<8x128xf32, #tpu.memory_space<vmem>>, vector<8x128xf32>
    %c0_1 = arith.constant 0 : index
    %c0_2 = arith.constant 0 : index
    %1 = vector.load %arg1[%c0_1, %c0_2] : memref<8x128xf32, #tpu.memory_space<vmem>>, vector<8x128xf32>
    %c0_3 = arith.constant 0 : index
    %c0_4 = arith.constant 0 : index
    %2 = vector.load %arg2[%c0_3, %c0_4] : memref<8x128xf32, #tpu.memory_space<vmem>>, vector<8x128xf32>
    %c0_5 = arith.constant 0 : index
    %c0_6 = arith.constant 0 : index
    %3 = vector.load %arg3[%c0_5, %c0_6] : memref<8x128xf32, #tpu.memory_space<vmem>>, vector<8x128xf32>
    %c0_7 = arith.constant 0 : index
    %c0_8 = arith.constant 0 : index
    %4 = vector.load %arg4[%c0_7, %c0_8] : memref<8x128xf32, #tpu.memory_space<vmem>>, vector<8x128xf32>
    %5 = tpu.concatenate %0, %1, %2, %3, %4 in 0 : vector<8x128xf32>, vector<8x128xf32>, vector<8x128xf32>, vector<8x128xf32>, vector<8x128xf32> -> vector<40x128xf32>
    %6 = arith.mulf %5, %5 : vector<40x128xf32>
    %cst = arith.constant dense<0.000000e+00> : vector<40xf32>
    %7 = vector.multi_reduction <add>, %6, %cst [1] : vector<40x128xf32> to vector<40xf32>
    %8 = vector.shape_cast %7 : vector<40xf32> to vector<40x1xf32>
    %cst_9 = arith.constant 1.000000e-24 : f32
    %9 = vector.broadcast %cst_9 : f32 to vector<40x1xf32>
    %10 = arith.maximumf %8, %9 : vector<40x1xf32>
    %11 = math.rsqrt %10 : vector<40x1xf32>
    %12 = vector.broadcast %11 : vector<40x1xf32> to vector<40x128xf32>
    %13 = arith.mulf %5, %12 : vector<40x128xf32>
    %cst_10 = arith.constant dense<0.000000e+00> : vector<40x40xf32>
    %14 = tpu.matmul %13, %13, %cst_10 {dimension_numbers = #tpu.dot_dimension_numbers<[1], [1], [0], [0], [0, 0, 1, 0], [], []>} : vector<40x128xf32>, vector<40x128xf32>, vector<40x40xf32> -> vector<40x40xf32>
    %15 = vector.extract_strided_slice %13 {offsets = [0, 0], sizes = [8, 128], strides = [1, 1]} : vector<40x128xf32> to vector<8x128xf32>
    %16 = vector.extract_strided_slice %13 {offsets = [8, 0], sizes = [8, 128], strides = [1, 1]} : vector<40x128xf32> to vector<8x128xf32>
    %17 = vector.extract_strided_slice %13 {offsets = [16, 0], sizes = [8, 128], strides = [1, 1]} : vector<40x128xf32> to vector<8x128xf32>
    %18 = vector.extract_strided_slice %13 {offsets = [24, 0], sizes = [8, 128], strides = [1, 1]} : vector<40x128xf32> to vector<8x128xf32>
    %19 = vector.extract_strided_slice %13 {offsets = [32, 0], sizes = [8, 128], strides = [1, 1]} : vector<40x128xf32> to vector<8x128xf32>
    %20 = arith.addf %15, %16 : vector<8x128xf32>
    %21 = arith.addf %20, %17 : vector<8x128xf32>
    %22 = arith.mulf %21, %18 : vector<8x128xf32>
    %23 = vector.shape_cast %22 : vector<8x128xf32> to vector<1x8x128xf32>
    %cst_11 = arith.constant dense<0.000000e+00> : vector<1xf32>
    %24 = vector.multi_reduction <add>, %23, %cst_11 [1, 2] : vector<1x8x128xf32> to vector<1xf32>
    %25 = vector.shape_cast %24 : vector<1xf32> to vector<1x1x1xf32>
    %26 = vector.extract %25[0, 0, 0] : f32 from vector<1x1x1xf32>
    %27 = arith.mulf %21, %19 : vector<8x128xf32>
    %28 = vector.shape_cast %27 : vector<8x128xf32> to vector<1x8x128xf32>
    %cst_12 = arith.constant dense<0.000000e+00> : vector<1xf32>
    %29 = vector.multi_reduction <add>, %28, %cst_12 [1, 2] : vector<1x8x128xf32> to vector<1xf32>
    %30 = vector.shape_cast %29 : vector<1xf32> to vector<1x1x1xf32>
    %31 = vector.extract %30[0, 0, 0] : f32 from vector<1x1x1xf32>
    %32 = arith.addf %26, %31 : f32
    %33 = vector.extract_strided_slice %14 {offsets = [0, 24], sizes = [24, 8], strides = [1, 1]} : vector<40x40xf32> to vector<24x8xf32>
    %cst_13 = arith.constant 1.000000e+01 : f32
    %34 = vector.broadcast %cst_13 : f32 to vector<24x8xf32>
    %35 = arith.mulf %33, %34 : vector<24x8xf32>
    %cst_14 = arith.constant dense<0xFF800000> : vector<24xf32>
    %36 = vector.multi_reduction <maximumf>, %35, %cst_14 [1] : vector<24x8xf32> to vector<24xf32>
    %37 = vector.shape_cast %36 : vector<24xf32> to vector<24x1xf32>
    %38 = vector.broadcast %37 : vector<24x1xf32> to vector<24x8xf32>
    %39 = arith.subf %35, %38 : vector<24x8xf32>
    %40 = math.exp %39 : vector<24x8xf32>
    %cst_15 = arith.constant dense<0.000000e+00> : vector<24xf32>
    %41 = vector.multi_reduction <add>, %40, %cst_15 [1] : vector<24x8xf32> to vector<24xf32>
    %42 = vector.shape_cast %41 : vector<24xf32> to vector<24x1xf32>
    %43 = math.log %42 : vector<24x1xf32>
    %44 = arith.addf %37, %43 : vector<24x1xf32>
    %45 = vector.shape_cast %44 : vector<24x1xf32> to vector<1x24x1xf32>
    %cst_16 = arith.constant dense<0.000000e+00> : vector<1xf32>
    %46 = vector.multi_reduction <add>, %45, %cst_16 [1, 2] : vector<1x24x1xf32> to vector<1xf32>
    %47 = vector.shape_cast %46 : vector<1xf32> to vector<1x1x1xf32>
    %48 = vector.extract %47[0, 0, 0] : f32 from vector<1x1x1xf32>
    %49 = vector.extract_strided_slice %14 {offsets = [0, 32], sizes = [24, 8], strides = [1, 1]} : vector<40x40xf32> to vector<24x8xf32>
    %cst_17 = arith.constant 1.000000e+01 : f32
    %50 = vector.broadcast %cst_17 : f32 to vector<24x8xf32>
    %51 = arith.mulf %49, %50 : vector<24x8xf32>
    %cst_18 = arith.constant dense<0xFF800000> : vector<24xf32>
    %52 = vector.multi_reduction <maximumf>, %51, %cst_18 [1] : vector<24x8xf32> to vector<24xf32>
    %53 = vector.shape_cast %52 : vector<24xf32> to vector<24x1xf32>
    %54 = vector.broadcast %53 : vector<24x1xf32> to vector<24x8xf32>
    %55 = arith.subf %51, %54 : vector<24x8xf32>
    %56 = math.exp %55 : vector<24x8xf32>
    %cst_19 = arith.constant dense<0.000000e+00> : vector<24xf32>
    %57 = vector.multi_reduction <add>, %56, %cst_19 [1] : vector<24x8xf32> to vector<24xf32>
    %58 = vector.shape_cast %57 : vector<24xf32> to vector<24x1xf32>
    %59 = math.log %58 : vector<24x1xf32>
    %60 = arith.addf %53, %59 : vector<24x1xf32>
    %61 = vector.shape_cast %60 : vector<24x1xf32> to vector<1x24x1xf32>
    %cst_20 = arith.constant dense<0.000000e+00> : vector<1xf32>
    %62 = vector.multi_reduction <add>, %61, %cst_20 [1, 2] : vector<1x24x1xf32> to vector<1xf32>
    %63 = vector.shape_cast %62 : vector<1xf32> to vector<1x1x1xf32>
    %64 = vector.extract %63[0, 0, 0] : f32 from vector<1x1x1xf32>
    %65 = arith.addf %48, %64 : f32
    %66 = vector.extract_strided_slice %14 {offsets = [24, 0], sizes = [16, 8], strides = [1, 1]} : vector<40x40xf32> to vector<16x8xf32>
    %cst_21 = arith.constant 1.000000e+01 : f32
    %67 = vector.broadcast %cst_21 : f32 to vector<16x8xf32>
    %68 = arith.mulf %66, %67 : vector<16x8xf32>
    %cst_22 = arith.constant dense<0xFF800000> : vector<16xf32>
    %69 = vector.multi_reduction <maximumf>, %68, %cst_22 [1] : vector<16x8xf32> to vector<16xf32>
    %70 = vector.shape_cast %69 : vector<16xf32> to vector<16x1xf32>
    %71 = vector.broadcast %70 : vector<16x1xf32> to vector<16x8xf32>
    %72 = arith.subf %68, %71 : vector<16x8xf32>
    %73 = math.exp %72 : vector<16x8xf32>
    %cst_23 = arith.constant dense<0.000000e+00> : vector<16xf32>
    %74 = vector.multi_reduction <add>, %73, %cst_23 [1] : vector<16x8xf32> to vector<16xf32>
    %75 = vector.shape_cast %74 : vector<16xf32> to vector<16x1xf32>
    %76 = math.log %75 : vector<16x1xf32>
    %77 = arith.addf %70, %76 : vector<16x1xf32>
    %78 = vector.shape_cast %77 : vector<16x1xf32> to vector<1x16x1xf32>
    %cst_24 = arith.constant dense<0.000000e+00> : vector<1xf32>
    %79 = vector.multi_reduction <add>, %78, %cst_24 [1, 2] : vector<1x16x1xf32> to vector<1xf32>
    %80 = vector.shape_cast %79 : vector<1xf32> to vector<1x1x1xf32>
    %81 = vector.extract %80[0, 0, 0] : f32 from vector<1x1x1xf32>
    %82 = arith.addf %65, %81 : f32
    %83 = vector.extract_strided_slice %14 {offsets = [24, 8], sizes = [16, 8], strides = [1, 1]} : vector<40x40xf32> to vector<16x8xf32>
    %cst_25 = arith.constant 1.000000e+01 : f32
    %84 = vector.broadcast %cst_25 : f32 to vector<16x8xf32>
    %85 = arith.mulf %83, %84 : vector<16x8xf32>
    %cst_26 = arith.constant dense<0xFF800000> : vector<16xf32>
    %86 = vector.multi_reduction <maximumf>, %85, %cst_26 [1] : vector<16x8xf32> to vector<16xf32>
    %87 = vector.shape_cast %86 : vector<16xf32> to vector<16x1xf32>
    %88 = vector.broadcast %87 : vector<16x1xf32> to vector<16x8xf32>
    %89 = arith.subf %85, %88 : vector<16x8xf32>
    %90 = math.exp %89 : vector<16x8xf32>
    %cst_27 = arith.constant dense<0.000000e+00> : vector<16xf32>
    %91 = vector.multi_reduction <add>, %90, %cst_27 [1] : vector<16x8xf32> to vector<16xf32>
    %92 = vector.shape_cast %91 : vector<16xf32> to vector<16x1xf32>
    %93 = math.log %92 : vector<16x1xf32>
    %94 = arith.addf %87, %93 : vector<16x1xf32>
    %95 = vector.shape_cast %94 : vector<16x1xf32> to vector<1x16x1xf32>
    %cst_28 = arith.constant dense<0.000000e+00> : vector<1xf32>
    %96 = vector.multi_reduction <add>, %95, %cst_28 [1, 2] : vector<1x16x1xf32> to vector<1xf32>
    %97 = vector.shape_cast %96 : vector<1xf32> to vector<1x1x1xf32>
    %98 = vector.extract %97[0, 0, 0] : f32 from vector<1x1x1xf32>
    %99 = arith.addf %82, %98 : f32
    %100 = vector.extract_strided_slice %14 {offsets = [24, 16], sizes = [16, 8], strides = [1, 1]} : vector<40x40xf32> to vector<16x8xf32>
    %cst_29 = arith.constant 1.000000e+01 : f32
    %101 = vector.broadcast %cst_29 : f32 to vector<16x8xf32>
    %102 = arith.mulf %100, %101 : vector<16x8xf32>
    %cst_30 = arith.constant dense<0xFF800000> : vector<16xf32>
    %103 = vector.multi_reduction <maximumf>, %102, %cst_30 [1] : vector<16x8xf32> to vector<16xf32>
    %104 = vector.shape_cast %103 : vector<16xf32> to vector<16x1xf32>
    %105 = vector.broadcast %104 : vector<16x1xf32> to vector<16x8xf32>
    %106 = arith.subf %102, %105 : vector<16x8xf32>
    %107 = math.exp %106 : vector<16x8xf32>
    %cst_31 = arith.constant dense<0.000000e+00> : vector<16xf32>
    %108 = vector.multi_reduction <add>, %107, %cst_31 [1] : vector<16x8xf32> to vector<16xf32>
    %109 = vector.shape_cast %108 : vector<16xf32> to vector<16x1xf32>
    %110 = math.log %109 : vector<16x1xf32>
    %111 = arith.addf %104, %110 : vector<16x1xf32>
    %112 = vector.shape_cast %111 : vector<16x1xf32> to vector<1x16x1xf32>
    %cst_32 = arith.constant dense<0.000000e+00> : vector<1xf32>
    %113 = vector.multi_reduction <add>, %112, %cst_32 [1, 2] : vector<1x16x1xf32> to vector<1xf32>
    %114 = vector.shape_cast %113 : vector<1xf32> to vector<1x1x1xf32>
    %115 = vector.extract %114[0, 0, 0] : f32 from vector<1x1x1xf32>
    %116 = arith.addf %99, %115 : f32
    %cst_33 = arith.constant 2.000000e+01 : f32
    %117 = arith.mulf %cst_33, %32 : f32
    %118 = arith.subf %116, %117 : f32
    %cst_34 = arith.constant 8.000000e+00 : f32
    %119 = arith.divf %118, %cst_34 : f32
    %120 = vector.extract_strided_slice %14 {offsets = [0, 0], sizes = [8, 8], strides = [1, 1]} : vector<40x40xf32> to vector<8x8xf32>
    %121 = vector.extract_strided_slice %14 {offsets = [8, 8], sizes = [8, 8], strides = [1, 1]} : vector<40x40xf32> to vector<8x8xf32>
    %122 = arith.subf %120, %121 : vector<8x8xf32>
    %123 = arith.mulf %122, %122 : vector<8x8xf32>
    %124 = vector.shape_cast %123 : vector<8x8xf32> to vector<1x8x8xf32>
    %cst_35 = arith.constant dense<0.000000e+00> : vector<1xf32>
    %125 = vector.multi_reduction <add>, %124, %cst_35 [1, 2] : vector<1x8x8xf32> to vector<1xf32>
    %126 = vector.shape_cast %125 : vector<1xf32> to vector<1x1x1xf32>
    %127 = vector.extract %126[0, 0, 0] : f32 from vector<1x1x1xf32>
    %cst_36 = arith.constant 8.000000e+00 : f32
    %128 = arith.divf %127, %cst_36 : f32
    %129 = arith.addf %119, %128 : f32
    %130 = vector.broadcast %129 : f32 to vector<1x1xf32>
    %c0_37 = arith.constant 0 : index
    %c0_38 = arith.constant 0 : index
    %131 = vector.load %arg5[%c0_37, %c0_38] : memref<1x1xf32, #tpu.memory_space<vmem>>, vector<1x1xf32>
    tpu.vector_store %arg5[%c0_37, %c0_38], %130 {strides = array<i32>} : memref<1x1xf32, #tpu.memory_space<vmem>>, vector<1x1xf32>,
    return
  }
}

</mosaic_0001>

<llo_original>
// kernel: combined_loss.1
$region0: #{combined_loss.1}
  #allocation0 [shape = 'u32[]', space=smem, size = 0x4, offset = 0x4, fixed_abs, tag = 'smem constant byte address 0x4 - core index']
  #allocation1 [shape = 'u32[144,128]{1,0:T(1,128)}', space=vmem, size = 0x12000, scoped, tag = 'internal scratch']
  %s0 = inlined_call_operand.vmem [shape: f32[8,128], index: 0, kind: input, shape index: {}]
  %s1 = inlined_call_operand.vmem [shape: f32[8,128], index: 1, kind: input, shape index: {}]
  %s2 = inlined_call_operand.vmem [shape: f32[8,128], index: 2, kind: input, shape index: {}]
  %s3 = inlined_call_operand.vmem [shape: f32[8,128], index: 3, kind: input, shape index: {}]
  %s4 = inlined_call_operand.vmem [shape: f32[8,128], index: 4, kind: input, shape index: {}]
  %s5 = inlined_call_operand.hbm [shape: f32[1,1], index: 5, kind: output, shape index: {}]
  %s6 = sld [smem:[#allocation0]]
  $region30: #{combined_loss.1} parent=0
    _
  %s8 = ssub.s32 1, %s6
  %s9 = scalar_select 0, %s8, %s6
  $region1: #{combined_loss.1} parent=0
    #allocation2 [shape = 'u8[512]{0}', space=vmem, size = 0x400, scoped, tag = 'output window, operand 0, single buffered']
    #allocation3 [shape = 's32[1]{0}', space=sflag, size = 0x4, scoped, tag = 'scoped memory for combined_loss.1']
    %10 = vsyncpa [#allocation3], 0
    // Predicated region
    $region2: #{combined_loss.1} parent=1 // pred_check
      _
    $region3: #{combined_loss.1} parent=1 // pred_check_branch
      %12 = sbr.rel (0) target = $region5
    $region4: #{combined_loss.1} parent=1 // pred_region
      _
    $region5: #{combined_loss.1} parent=1 // pred_fallthru
      _
    // Predicated region
    $region6: #{combined_loss.1} parent=1 // pred_check
      _
    $region7: #{combined_loss.1} parent=1 // pred_check_branch
      %14 = sbr.rel (0) target = $region9
    $region8: #{combined_loss.1} parent=1 // pred_region
      _
    $region9: #{combined_loss.1} parent=1 // pred_fallthru
      _
    // Predicated region
    $region10: #{combined_loss.1} parent=1 // pred_check
      _
    $region11: #{combined_loss.1} parent=1 // pred_check_branch
      %16 = sbr.rel (0) target = $region13
    $region12: #{combined_loss.1} parent=1 // pred_region
      _
    $region13: #{combined_loss.1} parent=1 // pred_fallthru
      _
    // Predicated region
    $region14: #{combined_loss.1} parent=1 // pred_check
      _
    $region15: #{combined_loss.1} parent=1 // pred_check_branch
      %18 = sbr.rel (0) target = $region17
    $region16: #{combined_loss.1} parent=1 // pred_region
      _
    $region17: #{combined_loss.1} parent=1 // pred_fallthru
      _
    // Predicated region
    $region18: #{combined_loss.1} parent=1 // pred_check
      _
    $region19: #{combined_loss.1} parent=1 // pred_check_branch
      %20 = sbr.rel (0) target = $region21
    $region20: #{combined_loss.1} parent=1 // pred_region
      _
    $region21: #{combined_loss.1} parent=1 // pred_fallthru
      _
    %v21 = vld [vmem:[%s0] sm:$0xff]
    %v22 = vld [vmem:[%s1] sm:$0xff]
    %v23 = vld [vmem:[%s2] sm:$0xff]
    %v24 = vld [vmem:[%s3] sm:$0xff]
    %v25 = vld [vmem:[%s4] sm:$0xff]
    %v26 = vmul.f32 %v21, %v21
    %v27 = vmul.f32 %v22, %v22
    %v28 = vmul.f32 %v23, %v23
    %v29 = vmul.f32 %v24, %v24
    %v30 = vmul.f32 %v25, %v25
    %31 = vadd.xlane.f32.xlu0 %v26
    %v32 = vpop.xlane.xlu0 %31
    %33 = vadd.xlane.f32.xlu0 %v27
    %v34 = vpop.xlane.xlu0 %33
    %35 = vadd.xlane.f32.xlu0 %v28
    %v36 = vpop.xlane.xlu0 %35
    %37 = vadd.xlane.f32.xlu0 %v29
    %v38 = vpop.xlane.xlu0 %37
    %39 = vadd.xlane.f32.xlu0 %v30
    %v40 = vpop.xlane.xlu0 %39
    %v41 = vmax.f32 %v32, 1e-24
    %v42 = vmax.f32 %v34, 1e-24
    %v43 = vmax.f32 %v36, 1e-24
    %v44 = vmax.f32 %v38, 1e-24
    %v45 = vmax.f32 %v40, 1e-24
    %v46 = vrsqrt.pop %v41
    %v47 = vrsqrt.pop %v42
    %v48 = vrsqrt.pop %v43
    %v49 = vrsqrt.pop %v44
    %v50 = vrsqrt.pop %v45
    %v51 = vmul.f32 %v21, %v46
    %v52 = vmul.f32 %v22, %v47
    %v53 = vmul.f32 %v23, %v48
    %v54 = vmul.f32 %v24, %v49
    %v55 = vmul.f32 %v25, %v50
    %56 = vmatprep.subr.mxu0 0.0
    %57 = vmatpush1.xpose.msra.mxu0 0.0
    %58 = vmatprep.subr.mxu0 0.0
    %59 = vmatpush1.xpose.msra.mxu0 0.0
    %60 = vmatprep.subr.mxu0 0.0
    %61 = vmatpush1.xpose.msra.mxu0 0.0
    %62 = vmatprep.subr.mxu0 0.0
    %63 = vmatpush1.xpose.msra.mxu0 0.0
    %64 = vmatprep.subr.mxu0 0.0
    %65 = vmatpush1.xpose.msra.mxu0 0.0
    %66 = vmatprep.subr.mxu0 0.0
    %67 = vmatpush1.xpose.msra.mxu0 0.0
    %68 = vmatprep.subr.mxu0 0.0
    %69 = vmatpush1.xpose.msra.mxu0 0.0
    %70 = vmatprep.subr.mxu0 0.0
    %71 = vmatpush1.xpose.msra.mxu0 0.0
    %72 = vmatprep.subr.mxu0 0.0
    %73 = vmatpush1.xpose.msra.mxu0 0.0
    %74 = vmatprep.subr.mxu0 0.0
    %75 = vmatpush1.xpose.msra.mxu0 0.0
    %76 = vmatprep.subr.mxu0 0.0
    %77 = vmatpush1.xpose.msra.mxu0 0.0
    %78 = vmatprep.subr.mxu0 0.0
    %79 = vmatpush1.xpose.msra.mxu0 %v55
    %80 = vmatprep.subr.mxu0 0.0
    %81 = vmatpush1.xpose.msra.mxu0 %v54
    %82 = vmatprep.subr.mxu0 0.0
    %83 = vmatpush1.xpose.msra.mxu0 %v53
    %84 = vmatprep.subr.mxu0 0.0
    %85 = vmatpush1.xpose.msra.mxu0 %v52
    %86 = vmatprep.subr.mxu0 0.0
    %87 = vmatpush1.xpose.msra.mxu0 %v51
    %88 = vmatprep.subr.mxu0 0.0
    %89 = vmatpush2.xpose.msra.mxu0 0.0
    %90 = vmatprep.subr.mxu0 0.0
    %91 = vmatpush2.xpose.msra.mxu0 0.0
    %92 = vmatprep.subr.mxu0 0.0
    %93 = vmatpush2.xpose.msra.mxu0 0.0
    %94 = vmatprep.subr.mxu0 0.0
    %95 = vmatpush2.xpose.msra.mxu0 0.0
    %96 = vmatprep.subr.mxu0 0.0
    %97 = vmatpush2.xpose.msra.mxu0 0.0
    %98 = vmatprep.subr.mxu0 0.0
    %99 = vmatpush2.xpose.msra.mxu0 0.0
    %100 = vmatprep.subr.mxu0 0.0
    %101 = vmatpush2.xpose.msra.mxu0 0.0
    %102 = vmatprep.subr.mxu0 0.0
    %103 = vmatpush2.xpose.msra.mxu0 0.0
    %104 = vmatprep.subr.mxu0 0.0
    %105 = vmatpush2.xpose.msra.mxu0 0.0
    %106 = vmatprep.subr.mxu0 0.0
    %107 = vmatpush2.xpose.msra.mxu0 0.0
    %108 = vmatprep.subr.mxu0 0.0
    %109 = vmatpush2.xpose.msra.mxu0 0.0
    %110 = vmatprep.subr.mxu0 0.0
    %111 = vmatpush2.xpose.msra.mxu0 0.0
    %112 = vmatprep.subr.mxu0 0.0
    %113 = vmatpush2.xpose.msra.mxu0 0.0
    %114 = vmatprep.subr.mxu0 0.0
    %115 = vmatpush2.xpose.msra.mxu0 0.0
    %116 = vmatprep.subr.mxu0 0.0
    %117 = vmatpush2.xpose.msra.mxu0 0.0
    %118 = vmatprep.subr.mxu0 0.0
    %119 = vmatpush2.xpose.msra.mxu0 0.0
    %120 = vmatprep.mubr.f32.mxu0 0.0
    %121 = vmatmul.mubr.f32.gmra.mxu0 %v51
    %v122 = vpop.f32.mrf.mxu0
    %v123 = vadd.f32 0.0, %v122
    %v124 = vpop.f32.mrf.mxu0
    %125 = vmatprep.mubr.f32.mxu0 0.0
    %126 = vmatmul.mubr.f32.gmra.mxu0 %v52
    %v127 = vpop.f32.mrf.mxu0
    %v128 = vadd.f32 0.0, %v127
    %v129 = vpop.f32.mrf.mxu0
    %130 = vmatprep.mubr.f32.mxu0 0.0
    %131 = vmatmul.mubr.f32.gmra.mxu0 %v53
    %v132 = vpop.f32.mrf.mxu0
    %v133 = vadd.f32 0.0, %v132
    %v134 = vpop.f32.mrf.mxu0
    %135 = vmatprep.mubr.f32.mxu0 0.0
    %136 = vmatmul.mubr.f32.gmra.mxu0 %v54
    %v137 = vpop.f32.mrf.mxu0
    %v138 = vadd.f32 0.0, %v137
    %v139 = vpop.f32.mrf.mxu0
    %140 = vmatprep.mubr.f32.mxu0 0.0
    %141 = vmatmul.mubr.f32.gmra.mxu0 %v55
    %v142 = vpop.f32.mrf.mxu0
    %v143 = vadd.f32 0.0, %v142
    %v144 = vpop.f32.mrf.mxu0
    %145 = vdwg.mxu0
    %v146 = vadd.f32 %v51, %v52
    %v147 = vadd.f32 %v146, %v53
    %v148 = vmul.f32 %v147, %v54
    %149 = vadd.xlane.f32.xlu0 %v148
    %v150 = vpop.xlane.xlu0 %149
    %v151 = vrot.slane %v150, 4
    %v152 = vadd.f32 %v150, %v151
    %v153 = vrot.slane %v152, 2
    %v154 = vadd.f32 %v152, %v153
    %v155 = vrot.slane %v154, 1
    %v156 = vadd.f32 %v154, %v155
    %s157 = vtos %v156
    %v158 = vmul.f32 %v147, %v55
    %159 = vadd.xlane.f32.xlu0 %v158
    %v160 = vpop.xlane.xlu0 %159
    %v161 = vrot.slane %v160, 4
    %v162 = vadd.f32 %v160, %v161
    %v163 = vrot.slane %v162, 2
    %v164 = vadd.f32 %v162, %v163
    %v165 = vrot.slane %v164, 1
    %v166 = vadd.f32 %v164, %v165
    %s167 = vtos %v166
    %s168 = sadd.f32 %s157, %s167
    %v169 = vmul.f32 %v123, 10.0
    %v170 = vmul.f32 %v128, 10.0
    %v171 = vmul.f32 %v133, 10.0
    %vm172 = vcmask 261312
    %v173 = vsel %vm172, %v169, -inf
    %174 = vmax.xlane.f32.xlu0 %v173
    %v175 = vpop.xlane.xlu0 %174
    %v176 = vsel %vm172, %v170, -inf
    %177 = vmax.xlane.f32.xlu0 %v176
    %v178 = vpop.xlane.xlu0 %177
    %v179 = vsel %vm172, %v171, -inf
    %180 = vmax.xlane.f32.xlu0 %v179
    %v181 = vpop.xlane.xlu0 %180
    %v182 = vsub.f32 %v169, %v175
    %v183 = vsub.f32 %v170, %v178
    %v184 = vsub.f32 %v171, %v181
    %v185 = vmul.f32 %v182, 1.442695
    %v186 = vpow.pop %v185
    %v187 = vmul.f32 %v183, 1.442695
    %v188 = vpow.pop %v187
    %v189 = vmul.f32 %v184, 1.442695
    %v190 = vpow.pop %v189
    %194 = vrot.lane.b32.xlu0 %v186, 104
    %v195 = vpop.permute.xlu0 %194
    %196 = vrot.lane.b32.xlu0 %v188, 104
    %v197 = vpop.permute.xlu0 %196
    %198 = vrot.lane.b32.xlu0 %v190, 104
    %v199 = vpop.permute.xlu0 %198
    %vm203 = vcmask 64512
    %v204 = vsel %vm203, %v195, 0.0
    %205 = vadd.xlane.f32.xlu0 %v204
    %v206 = vpop.xlane.xlu0 %205
    %v207 = vsel %vm203, %v197, 0.0
    %208 = vadd.xlane.f32.xlu0 %v207
    %v209 = vpop.xlane.xlu0 %208
    %v210 = vsel %vm203, %v199, 0.0
    %211 = vadd.xlane.f32.xlu0 %v210
    %v212 = vpop.xlane.xlu0 %211
    %v213 = vlog2.pop %v206
    %v214 = vmul.f32 %v213, 0.6931472
    %v215 = vlog2.pop %v209
    %v216 = vmul.f32 %v215, 0.6931472
    %v217 = vlog2.pop %v212
    %v218 = vmul.f32 %v217, 0.6931472
    %v219 = vadd.f32 %v175, %v214
    %v220 = vadd.f32 %v178, %v216
    %v221 = vadd.f32 %v181, %v218
    %vm222 = vcmask 7168
    %v223 = vsel %vm222, %v219, 0.0
    %v224 = vsel %vm222, %v220, 0.0
    %v225 = vadd.f32 %v223, %v224
    %v226 = vsel %vm222, %v221, 0.0
    %v227 = vadd.f32 %v225, %v226
    %228 = vadd.xlane.f32.xlu0 %v227
    %v229 = vpop.xlane.xlu0 %228
    %v230 = vrot.slane %v229, 4
    %v231 = vadd.f32 %v229, %v230
    %v232 = vrot.slane %v231, 2
    %v233 = vadd.f32 %v231, %v232
    %v234 = vrot.slane %v233, 1
    %v235 = vadd.f32 %v233, %v234
    %s236 = vtos %v235
    %vm237 = vcmask 326912
    %v238 = vsel %vm237, %v169, -inf
    %239 = vmax.xlane.f32.xlu0 %v238
    %v240 = vpop.xlane.xlu0 %239
    %v241 = vsel %vm237, %v170, -inf
    %242 = vmax.xlane.f32.xlu0 %v241
    %v243 = vpop.xlane.xlu0 %242
    %v244 = vsel %vm237, %v171, -inf
    %245 = vmax.xlane.f32.xlu0 %v244
    %v246 = vpop.xlane.xlu0 %245
    %v247 = vsub.f32 %v169, %v240
    %v248 = vsub.f32 %v170, %v243
    %v249 = vsub.f32 %v171, %v246
    %v250 = vmul.f32 %v247, 1.442695
    %v251 = vpow.pop %v250
    %v252 = vmul.f32 %v248, 1.442695
    %v253 = vpow.pop %v252
    %v254 = vmul.f32 %v249, 1.442695
    %v255 = vpow.pop %v254
    %259 = vrot.lane.b32.xlu0 %v251, 96
    %v260 = vpop.permute.xlu0 %259
    %261 = vrot.lane.b32.xlu0 %v253, 96
    %v262 = vpop.permute.xlu0 %261
    %263 = vrot.lane.b32.xlu0 %v255, 96
    %v264 = vpop.permute.xlu0 %263
    %v268 = vsel %vm203, %v260, 0.0
    %269 = vadd.xlane.f32.xlu0 %v268
    %v270 = vpop.xlane.xlu0 %269
    %v271 = vsel %vm203, %v262, 0.0
    %272 = vadd.xlane.f32.xlu0 %v271
    %v273 = vpop.xlane.xlu0 %272
    %v274 = vsel %vm203, %v264, 0.0
    %275 = vadd.xlane.f32.xlu0 %v274
    %v276 = vpop.xlane.xlu0 %275
    %v277 = vlog2.pop %v270
    %v278 = vmul.f32 %v277, 0.6931472
    %v279 = vlog2.pop %v273
    %v280 = vmul.f32 %v279, 0.6931472
    %v281 = vlog2.pop %v276
    %v282 = vmul.f32 %v281, 0.6931472
    %v283 = vadd.f32 %v240, %v278
    %v284 = vadd.f32 %v243, %v280
    %v285 = vadd.f32 %v246, %v282
    %v286 = vsel %vm222, %v283, 0.0
    %v287 = vsel %vm222, %v284, 0.0
    %v288 = vadd.f32 %v286, %v287
    %v289 = vsel %vm222, %v285, 0.0
    %v290 = vadd.f32 %v288, %v289
    %291 = vadd.xlane.f32.xlu0 %v290
    %v292 = vpop.xlane.xlu0 %291
    %v293 = vrot.slane %v292, 4
    %v294 = vadd.f32 %v292, %v293
    %v295 = vrot.slane %v294, 2
    %v296 = vadd.f32 %v294, %v295
    %v297 = vrot.slane %v296, 1
    %v298 = vadd.f32 %v296, %v297
    %s299 = vtos %v298
    %s300 = sadd.f32 %s236, %s299
    %v301 = vmul.f32 %v138, 10.0
    %v302 = vmul.f32 %v143, 10.0
    %v303 = vsel %vm203, %v301, -inf
    %304 = vmax.xlane.f32.xlu0 %v303
    %v305 = vpop.xlane.xlu0 %304
    %v306 = vsel %vm203, %v302, -inf
    %307 = vmax.xlane.f32.xlu0 %v306
    %v308 = vpop.xlane.xlu0 %307
    %v309 = vsub.f32 %v301, %v305
    %v310 = vsub.f32 %v302, %v308
    %v311 = vmul.f32 %v309, 1.442695
    %v312 = vpow.pop %v311
    %v313 = vmul.f32 %v310, 1.442695
    %v314 = vpow.pop %v313
    %v315 = vsel %vm203, %v312, 0.0
    %316 = vadd.xlane.f32.xlu0 %v315
    %v317 = vpop.xlane.xlu0 %316
    %v318 = vsel %vm203, %v314, 0.0
    %319 = vadd.xlane.f32.xlu0 %v318
    %v320 = vpop.xlane.xlu0 %319
    %v321 = vlog2.pop %v317
    %v322 = vmul.f32 %v321, 0.6931472
    %v323 = vlog2.pop %v320
    %v324 = vmul.f32 %v323, 0.6931472
    %v325 = vadd.f32 %v305, %v322
    %v326 = vadd.f32 %v308, %v324
    %v327 = vsel %vm222, %v325, 0.0
    %v328 = vsel %vm222, %v326, 0.0
    %v329 = vadd.f32 %v327, %v328
    %330 = vadd.xlane.f32.xlu0 %v329
    %v331 = vpop.xlane.xlu0 %330
    %v332 = vrot.slane %v331, 4
    %v333 = vadd.f32 %v331, %v332
    %v334 = vrot.slane %v333, 2
    %v335 = vadd.f32 %v333, %v334
    %v336 = vrot.slane %v335, 1
    %v337 = vadd.f32 %v335, %v336
    %s338 = vtos %v337
    %s339 = sadd.f32 %s300, %s338
    %vm340 = vcmask 130112
    %v341 = vsel %vm340, %v301, -inf
    %342 = vmax.xlane.f32.xlu0 %v341
    %v343 = vpop.xlane.xlu0 %342
    %v344 = vsel %vm340, %v302, -inf
    %345 = vmax.xlane.f32.xlu0 %v344
    %v346 = vpop.xlane.xlu0 %345
    %v347 = vsub.f32 %v301, %v343
    %v348 = vsub.f32 %v302, %v346
    %v349 = vmul.f32 %v347, 1.442695
    %v350 = vpow.pop %v349
    %v351 = vmul.f32 %v348, 1.442695
    %v352 = vpow.pop %v351
    %355 = vrot.lane.b32.xlu0 %v350, 120
    %v356 = vpop.permute.xlu0 %355
    %357 = vrot.lane.b32.xlu0 %v352, 120
    %v358 = vpop.permute.xlu0 %357
    %v361 = vsel %vm203, %v356, 0.0
    %362 = vadd.xlane.f32.xlu0 %v361
    %v363 = vpop.xlane.xlu0 %362
    %v364 = vsel %vm203, %v358, 0.0
    %365 = vadd.xlane.f32.xlu0 %v364
    %v366 = vpop.xlane.xlu0 %365
    %v367 = vlog2.pop %v363
    %v368 = vmul.f32 %v367, 0.6931472
    %v369 = vlog2.pop %v366
    %v370 = vmul.f32 %v369, 0.6931472
    %v371 = vadd.f32 %v343, %v368
    %v372 = vadd.f32 %v346, %v370
    %v373 = vsel %vm222, %v371, 0.0
    %v374 = vsel %vm222, %v372, 0.0
    %v375 = vadd.f32 %v373, %v374
    %376 = vadd.xlane.f32.xlu0 %v375
    %v377 = vpop.xlane.xlu0 %376
    %v378 = vrot.slane %v377, 4
    %v379 = vadd.f32 %v377, %v378
    %v380 = vrot.slane %v379, 2
    %v381 = vadd.f32 %v379, %v380
    %v382 = vrot.slane %v381, 1
    %v383 = vadd.f32 %v381, %v382
    %s384 = vtos %v383
    %s385 = sadd.f32 %s339, %s384
    %vm386 = vcmask 195712
    %v387 = vsel %vm386, %v301, -inf
    %388 = vmax.xlane.f32.xlu0 %v387
    %v389 = vpop.xlane.xlu0 %388
    %v390 = vsel %vm386, %v302, -inf
    %391 = vmax.xlane.f32.xlu0 %v390
    %v392 = vpop.xlane.xlu0 %391
    %v393 = vsub.f32 %v301, %v389
    %v394 = vsub.f32 %v302, %v392
    %v395 = vmul.f32 %v393, 1.442695
    %v396 = vpow.pop %v395
    %v397 = vmul.f32 %v394, 1.442695
    %v398 = vpow.pop %v397
    %401 = vrot.lane.b32.xlu0 %v396, 112
    %v402 = vpop.permute.xlu0 %401
    %403 = vrot.lane.b32.xlu0 %v398, 112
    %v404 = vpop.permute.xlu0 %403
    %v407 = vsel %vm203, %v402, 0.0
    %408 = vadd.xlane.f32.xlu0 %v407
    %v409 = vpop.xlane.xlu0 %408
    %v410 = vsel %vm203, %v404, 0.0
    %411 = vadd.xlane.f32.xlu0 %v410
    %v412 = vpop.xlane.xlu0 %411
    %v413 = vlog2.pop %v409
    %v414 = vmul.f32 %v413, 0.6931472
    %v415 = vlog2.pop %v412
    %v416 = vmul.f32 %v415, 0.6931472
    %v417 = vadd.f32 %v389, %v414
    %v418 = vadd.f32 %v392, %v416
    %v419 = vsel %vm222, %v417, 0.0
    %v420 = vsel %vm222, %v418, 0.0
    %v421 = vadd.f32 %v419, %v420
    %422 = vadd.xlane.f32.xlu0 %v421
    %v423 = vpop.xlane.xlu0 %422
    %v424 = vrot.slane %v423, 4
    %v425 = vadd.f32 %v423, %v424
    %v426 = vrot.slane %v425, 2
    %v427 = vadd.f32 %v425, %v426
    %v428 = vrot.slane %v427, 1
    %v429 = vadd.f32 %v427, %v428
    %s430 = vtos %v429
    %s431 = sadd.f32 %s385, %s430
    %s432 = smul.f32 %s168, 20.0
    %s433 = ssub.f32 %s431, %s432
    %v434 = vrcp.pop 8.0
    %s435 = vtos %v434
    %s436 = smul.f32 %s433, %s435
    %438 = vrot.lane.b32.xlu0 %v128, 120
    %v439 = vpop.permute.xlu0 %438
    %v441 = vsub.f32 %v123, %v439
    %v442 = vmul.f32 %v441, %v441
    %v443 = vsel %vm203, %v442, 0.0
    %444 = vadd.xlane.f32.xlu0 %v443
    %v445 = vpop.xlane.xlu0 %444
    %v446 = vrot.slane %v445, 4
    %v447 = vadd.f32 %v445, %v446
    %v448 = vrot.slane %v447, 2
    %v449 = vadd.f32 %v447, %v448
    %v450 = vrot.slane %v449, 1
    %v451 = vadd.f32 %v449, %v450
    %s452 = vtos %v451
    %v453 = vrcp.pop 8.0
    %s454 = vtos %v453
    %s455 = smul.f32 %s452, %s454
    %s456 = sadd.f32 %s436, %s455
    %v457 = vstv %s456
    %vm458 = vcmask 0
    %459 = vst.msk [vmem:[#allocation2] sm:$0x1] %vm458, %v457
    // Predicated region
    $region22: #{combined_loss.1} parent=1 // pred_check
      _
    $region23: #{combined_loss.1} parent=1 // pred_check_branch
      %461 = sbr.rel (0) target = $region25
    $region24: #{combined_loss.1} parent=1 // pred_region
      %s463 = ssub.s32 16, 16
      %464 = vsyncadd [#allocation3], %s463
      %s466 = sshll.u32 [#allocation2], 4
      %s467 = int_to_ptr.vmem [resolvable:$true] %s466
      %469 = dma.vmem_to_hbm [thread:$0]  %s467, 16, %s5, [#allocation3]
    $region25: #{combined_loss.1} parent=1 // pred_fallthru
      _
    // Predicated region
    $region26: #{combined_loss.1} parent=1 // pred_check
      _
    $region27: #{combined_loss.1} parent=1 // pred_check_branch
      %471 = sbr.rel (0) target = $region29
    $region28: #{combined_loss.1} parent=1 // pred_region
      %472 = dma.done [#allocation3], 16
    $region29: #{combined_loss.1} parent=1 // pred_fallthru
      _
    %473 = vsyncpa [#allocation3], 1

</llo_original>
